<compile_context>
chip_gen: v5e
topology: v5e:2x2
jax: 0.10.0
libtpu: 0.0.40
codegen_flags: <defaults>
</compile_context>

<pallas_src>
import functools

import jax
import jax.numpy as jnp
import numpy as np
from jax.experimental import pallas as pl
from jax.experimental.pallas import tpu as pltpu


_NEG_BIG = -1e30  # finite "-inf" for padded logit lanes (avoids inf * 0 -> NaN)


def _round_up(x, m):
    return (x + m - 1) // m * m


def _cdiv(a, b):
    return (a + b - 1) // b


def _vmem_caps():
    """(vmem_limit_bytes to request, per-call block budget) for this TPU generation."""
    try:
        cap = int(pltpu.get_tpu_info().vmem_capacity_bytes)
    except Exception:  # interpret mode / query unavailable: assume v7x-sized VMEM
        cap = 64 << 20
    limit = min(cap // 2, 64 << 20)   # 64 MiB on v5e/v6e (128 MiB VMEM), 32 MiB on v7x
    return limit, limit // 2          # headroom for pipeline bookkeeping / temporaries


def _pick_tile_b(n_pad, per_row_bytes, budget, requested=None, max_tile=1024):
    if requested is None:
        tb = budget // max(per_row_bytes, 1)
    else:
        tb = requested
    tb = int(max(8, min(tb, max_tile, n_pad)))
    return (tb // 8) * 8


def _pad_logits(logits, n_pad, c_pad):
    n, c = logits.shape
    if n_pad == n and c_pad == c:
        return logits                       # common fast path: no extra HBM pass
    return jnp.pad(logits, ((0, n_pad - n), (0, c_pad - c)),
                   constant_values=_NEG_BIG)


# ---------------------------------------------------------------------------
# Kernel 1: plain cross-entropy (epoch <= es). No soft-label traffic at all.
# ---------------------------------------------------------------------------
def _ce_kernel(nvalid_ref, labels_ref, logits_ref, loss_ref, *, tile_b):
    i = pl.program_id(0)
    base = i * tile_b
    n_valid = nvalid_ref[0]

    logits = logits_ref[...].astype(jnp.float32)                     # (TB, Cp)

    # stable log-sum-exp
    m = jnp.max(logits, axis=-1, keepdims=True)
    shifted = logits - m                                             # pad lanes -> ~-1e30
    lse = jnp.log(jnp.sum(jnp.exp(shifted), axis=-1, keepdims=True))

    # gather the label logit via an iota compare (no explicit one-hot matmul)
    labels = labels_ref[...]                                         # (TB, 1) int32
    class_ids = jax.lax.broadcasted_iota(jnp.int32, logits.shape, 1)
    label_shifted = jnp.sum(jnp.where(class_ids == labels, shifted, 0.0),
                            axis=-1, keepdims=True)                  # (TB, 1)
    ce = lse - label_shifted                                         # (TB, 1)

    # mask ragged-tail rows (where, not multiply: garbage rows may be NaN)
    rows = jax.lax.broadcasted_iota(jnp.int32, (tile_b, 1), 0) + base
    tile_sum = jnp.sum(jnp.where(rows < n_valid, ce, 0.0))

    # lane-dense per-tile partial sum (lets the grid axis be "parallel")
    lane = jax.lax.broadcasted_iota(jnp.int32, (1, 1, 128), 2)
    loss_ref[...] = jnp.where(lane == 0, tile_sum, 0.0)


# ---------------------------------------------------------------------------
# Kernel 2: SELC loss + fused soft-label gather / EMA / in-place scatter.
# ---------------------------------------------------------------------------
def _selc_kernel(idx_ref, nvalid_ref, logits_ref, table_in_ref,
                 table_out_ref, loss_ref, soft_scr, sem, *, tile_b, momentum):
    i = pl.program_id(0)
    base = i * tile_b
    n_valid = nvalid_ref[0]

    # ---- fused gather: DMA this tile's (scattered) soft-label rows into VMEM ----
    def _gather_start(r, c):
        row_id = idx_ref[base + r]            # pad entries are 0 -> harmless reads
        pltpu.make_async_copy(table_in_ref.at[pl.ds(row_id, 1), :],
                              soft_scr.at[pl.ds(r, 1), :],
                              sem.at[0]).start()
        return c
    jax.lax.fori_loop(0, tile_b, _gather_start, 0)

    def _gather_wait(r, c):
        pltpu.make_async_copy(table_in_ref.at[pl.ds(0, 1), :],
                              soft_scr.at[pl.ds(0, 1), :],
                              sem.at[0]).wait()
        return c
    jax.lax.fori_loop(0, tile_b, _gather_wait, 0)

    # ---- stable softmax / log-softmax (EUP reciprocal keeps the divide free) ----
    logits = logits_ref[...].astype(jnp.float32)                     # (TB, Cp)
    m = jnp.max(logits, axis=-1, keepdims=True)
    shifted = logits - m
    exps = jnp.exp(shifted)                                          # pad lanes -> exactly 0
    denom = jnp.sum(exps, axis=-1, keepdims=True)
    softmax = exps * pl.reciprocal(denom, approx=True)
    log_softmax = shifted - jnp.log(denom)

    # ---- EMA soft-label update (padded class lanes stay exactly 0) ----
    new_soft = (momentum * soft_scr[...].astype(jnp.float32)
                + (1.0 - momentum) * softmax)
    soft_scr[...] = new_soft.astype(soft_scr.dtype)

    # ---- per-sample SELC loss, ragged-tail masked, reduced to a tile partial ----
    selc = -jnp.sum(log_softmax * new_soft, axis=-1, keepdims=True)  # (TB, 1)
    rows = jax.lax.broadcasted_iota(jnp.int32, (tile_b, 1), 0) + base
    tile_sum = jnp.sum(jnp.where(rows < n_valid, selc, 0.0))
    lane = jax.lax.broadcasted_iota(jnp.int32, (1, 1, 128), 2)
    loss_ref[...] = jnp.where(lane == 0, tile_sum, 0.0)

    # ---- fused scatter: DMA updated rows back in place (output aliases input) ----
    def _scatter_start(r, c):
        @pl.when(base + r < n_valid)          # never write ragged-tail pad rows
        def _():
            row_id = idx_ref[base + r]
            pltpu.make_async_copy(soft_scr.at[pl.ds(r, 1), :],
                                  table_out_ref.at[pl.ds(row_id, 1), :],
                                  sem.at[1]).start()
        return c
    jax.lax.fori_loop(0, tile_b, _scatter_start, 0)

    def _scatter_wait(r, c):
        @pl.when(base + r < n_valid)
        def _():
            pltpu.make_async_copy(soft_scr.at[pl.ds(0, 1), :],
                                  table_out_ref.at[pl.ds(0, 1), :],
                                  sem.at[1]).wait()
        return c
    jax.lax.fori_loop(0, tile_b, _scatter_wait, 0)


# ---------------------------------------------------------------------------
# Wrappers
# ---------------------------------------------------------------------------
@functools.partial(jax.jit, static_argnames=("tile_b",))
def selc_ce_loss(logits, labels, *, tile_b=None):
    """Mean cross-entropy over the batch (epoch <= es branch)."""
    n, c = logits.shape
    c_pad = _round_up(c, 128)
    n_pad = _round_up(n, 8)

    vmem_limit, budget = _vmem_caps()
    per_row = c_pad * (2 * logits.dtype.itemsize + 8) + 8   # 2 pipeline bufs + f32 temps
    tile_b = _pick_tile_b(n_pad, per_row, budget, requested=tile_b)
    grid = _cdiv(n_pad, tile_b)

    logits_p = _pad_logits(logits, n_pad, c_pad)
    labels_p = jnp.zeros((grid * tile_b, 1), jnp.int32).at[:n, 0].set(
        labels.astype(jnp.int32))
    n_valid = jnp.array([n], jnp.int32)

    kernel = functools.partial(_ce_kernel, tile_b=tile_b)
    partials = pl.pallas_call(
        kernel,
        out_shape=jax.ShapeDtypeStruct((grid, 1, 128), jnp.float32),
        grid_spec=pltpu.PrefetchScalarGridSpec(
            num_scalar_prefetch=1,                    # n_valid lands in SMEM
            grid=(grid,),
            in_specs=[pl.BlockSpec((tile_b, 1), lambda i, nv: (i, 0)),
                      pl.BlockSpec((tile_b, c_pad), lambda i, nv: (i, 0))],
            out_specs=pl.BlockSpec((1, 1, 128), lambda i, nv: (i, 0, 0))),
        compiler_params=pltpu.CompilerParams(
            dimension_semantics=("parallel",),        # per-tile sums -> both TCs on v7x
            vmem_limit_bytes=vmem_limit),
    )(n_valid, labels_p, logits_p)
    return jnp.sum(partials) / n


@functools.partial(jax.jit, donate_argnums=(1,),
                   static_argnames=("momentum", "tile_b"))
def selc_soft_loss_and_update(logits, soft_table, index, *, momentum, tile_b=None):
    """epoch > es branch: fused gather + EMA + SELC loss + in-place scatter.

    Returns (mean SELC loss, updated soft-label table).  The table is donated
    and the pallas_call output aliases it, so the EMA update is in place in HBM.
    Note: duplicate ids inside `index` resolve last-writer-wins (same as the
    PyTorch indexed assignment).
    """
    n, c = logits.shape
    num_rows, c_pad = soft_table.shape
    assert c_pad == _round_up(c, 128) and c_pad >= c
    n_pad = _round_up(n, 8)

    vmem_limit, budget = _vmem_caps()
    per_row = c_pad * (2 * logits.dtype.itemsize          # double-buffered logits blocks
                       + soft_table.dtype.itemsize        # gathered-row scratch
                       + 16) + 32                         # f32 temporaries headroom
    tile_b = _pick_tile_b(n_pad, per_row, budget, requested=tile_b)
    grid = _cdiv(n_pad, tile_b)

    logits_p = _pad_logits(logits, n_pad, c_pad)
    idx_p = jnp.zeros((grid * tile_b,), jnp.int32).at[:n].set(index.astype(jnp.int32))
    n_valid = jnp.array([n], jnp.int32)

    kernel = functools.partial(_selc_kernel, tile_b=tile_b, momentum=float(momentum))
    new_table, partials = pl.pallas_call(
        kernel,
        out_shape=(jax.ShapeDtypeStruct(soft_table.shape, soft_table.dtype),
                   jax.ShapeDtypeStruct((grid, 1, 128), jnp.float32)),
        grid_spec=pltpu.PrefetchScalarGridSpec(
            num_scalar_prefetch=2,                         # (index, n_valid) -> SMEM
            grid=(grid,),
            in_specs=[pl.BlockSpec((tile_b, c_pad), lambda i, idx, nv: (i, 0)),
                      pl.BlockSpec(memory_space=pl.ANY)],  # whole table stays in HBM
            out_specs=(pl.BlockSpec(memory_space=pl.ANY),  # same buffer (aliased below)
                       pl.BlockSpec((1, 1, 128), lambda i, idx, nv: (i, 0, 0))),
            scratch_shapes=[pltpu.VMEM((tile_b, c_pad), soft_table.dtype),
                            pltpu.SemaphoreType.DMA((2,))]),
        # call args are (index, n_valid, logits, table): table (3) aliases output 0
        input_output_aliases={3: 0},
        compiler_params=pltpu.CompilerParams(
            dimension_semantics=("parallel",),
            vmem_limit_bytes=vmem_limit),
    )(idx_p, n_valid, logits_p, soft_table)
    return jnp.sum(partials) / n, new_table


class SELCLoss:
    """JAX/Pallas port of the PyTorch SELCLoss module (forward only).

    The soft-label table is stored lane-padded to a multiple of 128 classes so
    every in-kernel DMA row is lane-dense; the padded class columns stay 0.
    """

    def __init__(self, labels, num_classes, es=10, momentum=0.9):
        labels = jnp.asarray(labels, jnp.int32)
        self.num_classes = num_classes
        self.c_pad = _round_up(num_classes, 128)
        # soft_labels initialized one-hot from the (noisy) dataset labels
        self.soft_labels = jax.nn.one_hot(labels, self.c_pad, dtype=jnp.float32)
        self.es = es
        self.momentum = float(momentum)

    def __call__(self, logits, labels, index, epoch, tile_b=None):
        if epoch <= self.es:
            # CE-only kernel: no soft-label traffic at all
            return selc_ce_loss(logits, labels, tile_b=tile_b)
        # Fused SELC kernel: gather + EMA + loss + in-place scatter
        loss, self.soft_labels = selc_soft_loss_and_update(
            logits, self.soft_labels, jnp.asarray(index),
            momentum=self.momentum, tile_b=tile_b)
        return loss


# ---------------------------------------------------------------------------
# Pure-JAX references
# ---------------------------------------------------------------------------
def _reference_ce(logits, labels):
    logp = jax.nn.log_softmax(logits.astype(jnp.float32), axis=1)
    return -jnp.mean(jnp.take_along_axis(logp, labels[:, None], axis=1))


def _reference_selc(logits, soft_in, momentum):
    logits = logits.astype(jnp.float32)
    logp = jax.nn.log_softmax(logits, axis=1)
    p = jax.nn.softmax(logits, axis=1)
    new_soft = momentum * soft_in + (1.0 - momentum) * p
    return jnp.mean(-jnp.sum(logp * new_soft, axis=1)), new_soft


if __name__ == "__main__":
    key = jax.random.PRNGKey(0)
    k_lbl, k_logits, k_idx, k_lbl2, k_logits2, k_idx2 = jax.random.split(key, 6)

    # ---- Case 1: odd shapes (C=50 lane-pads to 128, batch=12 row-pads to 16);
    # ----         tile_b=8 forces a 2-tile grid + masked ragged rows.
    num_samples, num_classes, batch = 64, 50, 12
    dataset_labels = jax.random.randint(k_lbl, (num_samples,), 0, num_classes,
                                        dtype=jnp.int32)
    selc = SELCLoss(dataset_labels, num_classes, es=10, momentum=0.9)

    index = jax.random.permutation(k_idx, num_samples)[:batch]
    labels = dataset_labels[index]
    logits = jax.random.normal(k_logits, (batch, num_classes), dtype=jnp.float32)

    # epoch <= es: plain cross-entropy
    loss_ce = selc(logits, labels, index, epoch=5, tile_b=8)
    jax.block_until_ready(loss_ce)
    ref_ce = _reference_ce(logits, labels)
    assert jnp.allclose(loss_ce, ref_ce, atol=1e-4, rtol=1e-4), (loss_ce, ref_ce)

    # epoch > es: SELC loss + in-place EMA soft-label table update
    table_before = np.asarray(selc.soft_labels)        # host copy (donation-safe)
    soft_before = jnp.asarray(table_before[np.asarray(index), :num_classes])
    loss_selc = selc(logits, labels, index, epoch=12, tile_b=8)
    jax.block_until_ready(loss_selc)
    ref_selc, ref_soft = _reference_selc(logits, soft_before, 0.9)
    assert jnp.allclose(loss_selc, ref_selc, atol=2e-3, rtol=2e-3), (loss_selc, ref_selc)

    got_soft = selc.soft_labels[index][:, :num_classes]
    assert jnp.allclose(got_soft, ref_soft, atol=2e-3, rtol=2e-3)
    # rows not in this batch (incl. pad rows) must be untouched by the in-kernel scatter
    untouched = np.setdiff1d(np.arange(num_samples), np.asarray(index))
    assert np.array_equal(np.asarray(selc.soft_labels)[untouched],
                          table_before[untouched])

    # ---- Case 2: aligned shapes (no wrapper padding), bf16 logits, auto tile_b.
    num_samples2, num_classes2, batch2 = 32, 128, 16
    dataset_labels2 = jax.random.randint(k_lbl2, (num_samples2,), 0, num_classes2,
                                         dtype=jnp.int32)
    selc2 = SELCLoss(dataset_labels2, num_classes2, es=10, momentum=0.9)
    index2 = jax.random.permutation(k_idx2, num_samples2)[:batch2]
    labels2 = dataset_labels2[index2]
    logits2 = jax.random.normal(k_logits2, (batch2, num_classes2),
                                dtype=jnp.float32).astype(jnp.bfloat16)

    loss_ce2 = selc2(logits2, labels2, index2, epoch=1)
    ref_ce2 = _reference_ce(logits2.astype(jnp.float32), labels2)
    soft_before2 = selc2.soft_labels[index2][:, :num_classes2]
    loss_selc2 = selc2(logits2, labels2, index2, epoch=20)
    jax.block_until_ready(loss_selc2)
    ref_selc2, ref_soft2 = _reference_selc(logits2.astype(jnp.float32),
                                           soft_before2, 0.9)
    assert jnp.allclose(loss_ce2, ref_ce2, atol=1e-4, rtol=1e-4), (loss_ce2, ref_ce2)
    assert jnp.allclose(loss_selc2, ref_selc2, atol=2e-3, rtol=2e-3), (loss_selc2, ref_selc2)
    assert jnp.allclose(selc2.soft_labels[index2][:, :num_classes2], ref_soft2,
                        atol=2e-3, rtol=2e-3)

    print("KERNEL_OK")
</pallas_src>

<mosaic_0001>
module attributes {stable_mosaic.version = 11 : i64} {
  func.func @_ce_kernel(%arg0: i32, %arg1: memref<1xi32, #tpu.memory_space<smem>>, %arg2: memref<8x1xi32, #tpu.memory_space<vmem>>, %arg3: memref<8x128xf32, #tpu.memory_space<vmem>>, %arg4: memref<1x1x128xf32, #tpu.memory_space<vmem>>) attributes {dimension_semantics = [#tpu.dimension_semantics<parallel>], iteration_bounds = array<i64: 2>, scalar_prefetch = 1 : i64, scratch_operands = 0 : i64, tpu.core_type = #tpu.core_type<tc>, window_params = [{transform_indices = @transform_0, window_bounds = array<i64: 8, 1>}, {transform_indices = @transform_1, window_bounds = array<i64: 8, 128>}, {transform_indices = @transform_2, window_bounds = array<i64: 1, 1, 128>}]} {
    %c8_i32 = arith.constant 8 : i32
    %0 = arith.muli %arg0, %c8_i32 : i32
    %c0 = arith.constant 0 : index
    %1 = memref.load %arg1[%c0] : memref<1xi32, #tpu.memory_space<smem>>
    %c0_0 = arith.constant 0 : index
    %c0_1 = arith.constant 0 : index
    %2 = vector.load %arg3[%c0_0, %c0_1] : memref<8x128xf32, #tpu.memory_space<vmem>>, vector<8x128xf32>
    %cst = arith.constant dense<0xFF800000> : vector<8xf32>
    %3 = vector.multi_reduction <maximumf>, %2, %cst [1] : vector<8x128xf32> to vector<8xf32>
    %4 = vector.shape_cast %3 : vector<8xf32> to vector<8x1xf32>
    %5 = vector.broadcast %4 : vector<8x1xf32> to vector<8x128xf32>
    %6 = arith.subf %2, %5 : vector<8x128xf32>
    %7 = math.exp %6 : vector<8x128xf32>
    %cst_2 = arith.constant dense<0.000000e+00> : vector<8xf32>
    %8 = vector.multi_reduction <add>, %7, %cst_2 [1] : vector<8x128xf32> to vector<8xf32>
    %9 = vector.shape_cast %8 : vector<8xf32> to vector<8x1xf32>
    %10 = math.log %9 : vector<8x1xf32>
    %c0_3 = arith.constant 0 : index
    %c0_4 = arith.constant 0 : index
    %11 = vector.load %arg2[%c0_3, %c0_4] : memref<8x1xi32, #tpu.memory_space<vmem>>, vector<8x1xi32>
    %12 = tpu.iota {dimensions = array<i32: 1>} : vector<8x128xi32>
    %13 = vector.broadcast %11 : vector<8x1xi32> to vector<8x128xi32>
    %14 = arith.cmpi eq, %12, %13 : vector<8x128xi32>
    %cst_5 = arith.constant 0.000000e+00 : f32
    %15 = vector.broadcast %cst_5 : f32 to vector<8x128xf32>
    %16 = arith.select %14, %6, %15 : vector<8x128xi1>, vector<8x128xf32>
    %cst_6 = arith.constant dense<0.000000e+00> : vector<8xf32>
    %17 = vector.multi_reduction <add>, %16, %cst_6 [1] : vector<8x128xf32> to vector<8xf32>
    %18 = vector.shape_cast %17 : vector<8xf32> to vector<8x1xf32>
    %19 = arith.subf %10, %18 : vector<8x1xf32>
    %20 = tpu.iota {dimensions = array<i32: 0>} : vector<8x1xi32>
    %21 = vector.broadcast %0 : i32 to vector<8x1xi32>
    %22 = arith.addi %20, %21 : vector<8x1xi32>
    %23 = vector.broadcast %1 : i32 to vector<8x1xi32>
    %24 = arith.cmpi slt, %22, %23 : vector<8x1xi32>
    %cst_7 = arith.constant 0.000000e+00 : f32
    %25 = vector.broadcast %cst_7 : f32 to vector<8x1xf32>
    %26 = arith.select %24, %19, %25 : vector<8x1xi1>, vector<8x1xf32>
    %27 = vector.shape_cast %26 : vector<8x1xf32> to vector<1x8x1xf32>
    %cst_8 = arith.constant dense<0.000000e+00> : vector<1xf32>
    %28 = vector.multi_reduction <add>, %27, %cst_8 [1, 2] : vector<1x8x1xf32> to vector<1xf32>
    %29 = vector.shape_cast %28 : vector<1xf32> to vector<1x1x1xf32>
    %30 = vector.extract %29[0, 0, 0] : f32 from vector<1x1x1xf32>
    %31 = tpu.iota {dimensions = array<i32: 2>} : vector<1x1x128xi32>
    %c0_i32 = arith.constant 0 : i32
    %32 = vector.broadcast %c0_i32 : i32 to vector<1x1x128xi32>
    %33 = arith.cmpi eq, %31, %32 : vector<1x1x128xi32>
    %cst_9 = arith.constant 0.000000e+00 : f32
    %34 = vector.broadcast %30 : f32 to vector<1x1x128xf32>
    %35 = vector.broadcast %cst_9 : f32 to vector<1x1x128xf32>
    %36 = arith.select %33, %34, %35 : vector<1x1x128xi1>, vector<1x1x128xf32>
    %c0_10 = arith.constant 0 : index
    %c0_11 = arith.constant 0 : index
    %c0_12 = arith.constant 0 : index
    %37 = vector.load %arg4[%c0_10, %c0_11, %c0_12] : memref<1x1x128xf32, #tpu.memory_space<vmem>>, vector<1x1x128xf32>
    tpu.vector_store %arg4[%c0_10, %c0_11, %c0_12], %36 {strides = array<i32>} : memref<1x1x128xf32, #tpu.memory_space<vmem>>, vector<1x1x128xf32>,
    return
  }
  func.func @transform_0(%arg0: i32, %arg1: memref<1xi32, #tpu.memory_space<smem>>) -> (i32, i32) {
    %c0_i32 = arith.constant 0 : i32
    %c0_i32_0 = arith.constant 0 : i32
    return %arg0, %c0_i32 : i32, i32
  }
  func.func @transform_1(%arg0: i32, %arg1: memref<1xi32, #tpu.memory_space<smem>>) -> (i32, i32) {
    %c0_i32 = arith.constant 0 : i32
    %c0_i32_0 = arith.constant 0 : i32
    return %arg0, %c0_i32 : i32, i32
  }
  func.func @transform_2(%arg0: i32, %arg1: memref<1xi32, #tpu.memory_space<smem>>) -> (i32, i32, i32) {
    %c0_i32 = arith.constant 0 : i32
    %c0_i32_0 = arith.constant 0 : i32
    %c0_i32_1 = arith.constant 0 : i32
    return %arg0, %c0_i32, %c0_i32_0 : i32, i32, i32
  }
}

</mosaic_0001>

<llo_original>
// kernel: selc_ce_loss.1
$region0: #{selc_ce_loss.1}
  #allocation0 [shape = 'u32[]', space=smem, size = 0x4, offset = 0x4, fixed_abs, tag = 'smem constant byte address 0x4 - core index']
  #allocation1 [shape = 'u32[72,128]{1,0:T(1,128)}', space=vmem, size = 0x9000, scoped, tag = 'internal scratch']
  #allocation2 [shape = 's32[1]{0}', space=sflag, size = 0x4, scoped, tag = 'scoped memory for selc_ce_loss.1']
  #allocation3 [shape = 's32[1]{0:T(128)S(6)}', space=smem, size = 0x200, scoped, tag = 'prefetched SMEM operand 0']
  %s0 = inlined_call_operand.<no memory space> [shape: s32[1], index: 0, kind: input, shape index: {}]
  %s1 = inlined_call_operand.vmem [shape: s32[16,1], index: 1, kind: input, shape index: {}]
  %s2 = inlined_call_operand.vmem [shape: f32[16,128], index: 2, kind: input, shape index: {}]
  %s3 = inlined_call_operand.vmem [shape: f32[2,1,128], index: 3, kind: output, shape index: {}]
  %s4 = sld [smem:[#allocation0]]
  $region41: #{selc_ce_loss.1} parent=0
    _
  %s6 = ssub.s32 1, %s4
  %s7 = scalar_select 0, %s6, %s4
  %8 = sst [smem:[#allocation3]] %s0
  loop: start=0, step=1, limit=4
  $region2: #{selc_ce_loss.1} parent=0 // loop_pre_header
    _
  $region3: #{selc_ce_loss.1} parent=0 // loop_header
    %s10 = sphi 0, %s14
    %p11 = scmp.ge.s32.totalorder %s10, 4
    %s20 = sphi 0, %s22
    %s23 = sphi 0, %s20
    %s24 = sphi 0, %s23
    %s40 = sphi 0, %s24
    %s46 = sphi 0, %s48
    %s49 = sphi 0, %s46
    %s50 = sphi 0, %s49
    %s66 = sphi 0, %s50
    %s72 = sphi 0, %s74
    %s75 = sphi 0, %s72
    %s76 = sphi 0, %s75
    %s92 = sphi 0, %s76
  $region4: #{selc_ce_loss.1} parent=0 // loop_header_branch
    %13 = sbr.rel (%p11) target = $region8
  $region5: #{selc_ce_loss.1} parent=0 // loop_body
    %s15 = ssub.s32 %s10, 1
    %s16 = ssub.s32 %s10, 2
    %s17 = sadd.s32 %s10, 1
    %s18 = ssub.s32 %s10, %s17
    %p19 = scmp.eq.s32.totalorder %s18, 0
    %s21 = sadd.s32 %s20, 1
    %s22 = scalar_select %p19, %s20, %s21
    %p25 = pneg %p19
    %p26 = scmp.eq.s32.totalorder %s10, 1
    %p27 = por %p25, %p26
    %p28 = scmp.ne.s32.totalorder %s20, %s23
    %p29 = scmp.eq.s32.totalorder %s10, 0
    %p30 = por %p28, %p29
    %p31 = scmp.ne.s32.totalorder %s20, %s23
    %p32 = scmp.eq.s32.totalorder %s15, 1
    %p33 = por %p31, %p32
    %p34 = scmp.ne.s32.totalorder %s23, %s24
    %p35 = scmp.eq.s32.totalorder %s15, 0
    %p36 = por %p34, %p35
    %p37 = scmp.ne.s32.totalorder %s23, %s24
    %p38 = scmp.eq.s32.totalorder %s16, 1
    %p39 = por %p37, %p38
    %p41 = scmp.ne.s32.totalorder %s24, %s40
    %p42 = scmp.eq.s32.totalorder %s16, 0
    %p43 = por %p41, %p42
    %s44 = ssub.s32 %s10, %s17
    %p45 = scmp.eq.s32.totalorder %s44, 0
    %s47 = sadd.s32 %s46, 1
    %s48 = scalar_select %p45, %s46, %s47
    %p51 = pneg %p45
    %p52 = scmp.eq.s32.totalorder %s10, 1
    %p53 = por %p51, %p52
    %p54 = scmp.ne.s32.totalorder %s46, %s49
    %p55 = scmp.eq.s32.totalorder %s10, 0
    %p56 = por %p54, %p55
    %p57 = scmp.ne.s32.totalorder %s46, %s49
    %p58 = scmp.eq.s32.totalorder %s15, 1
    %p59 = por %p57, %p58
    %p60 = scmp.ne.s32.totalorder %s49, %s50
    %p61 = scmp.eq.s32.totalorder %s15, 0
    %p62 = por %p60, %p61
    %p63 = scmp.ne.s32.totalorder %s49, %s50
    %p64 = scmp.eq.s32.totalorder %s16, 1
    %p65 = por %p63, %p64
    %p67 = scmp.ne.s32.totalorder %s50, %s66
    %p68 = scmp.eq.s32.totalorder %s16, 0
    %p69 = por %p67, %p68
    %s70 = ssub.s32 %s10, %s17
    %p71 = scmp.eq.s32.totalorder %s70, 0
    %s73 = sadd.s32 %s72, 1
    %s74 = scalar_select %p71, %s72, %s73
    %p77 = pneg %p71
    %p78 = scmp.eq.s32.totalorder %s10, 1
    %p79 = por %p77, %p78
    %p80 = scmp.ne.s32.totalorder %s72, %s75
    %p81 = scmp.eq.s32.totalorder %s10, 0
    %p82 = por %p80, %p81
    %p83 = scmp.ne.s32.totalorder %s72, %s75
    %p84 = scmp.eq.s32.totalorder %s15, 1
    %p85 = por %p83, %p84
    %p86 = scmp.ne.s32.totalorder %s75, %s76
    %p87 = scmp.eq.s32.totalorder %s15, 0
    %p88 = por %p86, %p87
    %p89 = scmp.ne.s32.totalorder %s75, %s76
    %p90 = scmp.eq.s32.totalorder %s16, 1
    %p91 = por %p89, %p90
    %p93 = scmp.ne.s32.totalorder %s76, %s92
    %p94 = scmp.eq.s32.totalorder %s16, 0
    %p95 = por %p93, %p94
    %p96 = scmp.le.s32.totalorder 1, %s10
    %p97 = scmp.lt.s32.totalorder %s10, 3
    %p98 = pnand %p96, %p97
    %p99 = pneg %p98
    // Predicated region
    $region9: #{selc_ce_loss.1} parent=5 // pred_check
      _
    $region10: #{selc_ce_loss.1} parent=5 // pred_check_branch
      %101 = sbr.rel (%p98) target = $region12
    $region11: #{selc_ce_loss.1} parent=5 // pred_region
      %s102 = ssub.s32 %s10, 1
    $region12: #{selc_ce_loss.1} parent=5 // pred_fallthru
      _
    %p103 = scmp.lt.s32.totalorder %s10, 2
    // Predicated region
    $region13: #{selc_ce_loss.1} parent=5 // pred_check
      %p104 = pneg %p103
    $region14: #{selc_ce_loss.1} parent=5 // pred_check_branch
      %106 = sbr.rel (%p104) target = $region16
    $region15: #{selc_ce_loss.1} parent=5 // pred_region
      // Predicated region
      $region17: #{selc_ce_loss.1} parent=15 // pred_check
        %p107 = pneg %p30
      $region18: #{selc_ce_loss.1} parent=15 // pred_check_branch
        %109 = sbr.rel (%p107) target = $region20
      $region19: #{selc_ce_loss.1} parent=15 // pred_region
        %p110 = scmp.lt.s32.totalorder %s10, 1
        %s111 = scalar_select %p110, %s10, 1
        %s112 = smul.addr %s111, 8
        %s113 = scalar_lea.vmem %s1, %s112
      $region20: #{selc_ce_loss.1} parent=15 // pred_fallthru
        _
      // Predicated region
      $region21: #{selc_ce_loss.1} parent=15 // pred_check
        %p114 = pneg %p56
      $region22: #{selc_ce_loss.1} parent=15 // pred_check_branch
        %116 = sbr.rel (%p114) target = $region24
      $region23: #{selc_ce_loss.1} parent=15 // pred_region
        %p117 = scmp.lt.s32.totalorder %s10, 1
        %s118 = scalar_select %p117, %s10, 1
        %s119 = smul.addr %s118, 8
        %s120 = scalar_lea.vmem %s2, %s119
      $region24: #{selc_ce_loss.1} parent=15 // pred_fallthru
        _
    $region16: #{selc_ce_loss.1} parent=5 // pred_fallthru
      _
    %p121 = scmp.le.s32.totalorder 1, %s10
    %p122 = scmp.lt.s32.totalorder %s10, 3
    %p123 = pnand %p121, %p122
    %p124 = pneg %p123
    // Predicated region
    $region25: #{selc_ce_loss.1} parent=5 // pred_check
      _
    $region26: #{selc_ce_loss.1} parent=5 // pred_check_branch
      %126 = sbr.rel (%p123) target = $region28
    $region27: #{selc_ce_loss.1} parent=5 // pred_region
      %s127 = ssub.s32 %s10, 1
      %p128 = scmp.lt.s32.totalorder %s15, 1
      %s129 = scalar_select %p128, %s15, 1
      %s130 = smul.addr %s129, 8
      %s131 = scalar_lea.vmem %s1, %s130
      %p132 = pneg %p36
      %p133 = pneg %p33
      %p134 = scmp.lt.s32.totalorder %s15, 1
      %s135 = scalar_select %p134, %s15, 1
      %s136 = smul.addr %s135, 8
      %s137 = scalar_lea.vmem %s2, %s136
      %p138 = pneg %p62
      %p139 = pneg %p59
      %p140 = pneg %p88
      %p141 = pneg %p85
      %p142 = scmp.lt.s32.totalorder %s15, 1
      %s143 = scalar_select %p142, %s15, 1
      %s144 = scalar_lea.vmem %s3, %s143
      %p145 = scmp.lt.s32.totalorder %s15, 1
      %s146 = scalar_select %p145, %s15, 1
      %s147 = smul.addr %s146, 8
      %s148 = scalar_lea.vmem %s1, %s147
      %p149 = scmp.lt.s32.totalorder %s15, 1
      %s150 = scalar_select %p149, %s15, 1
      %s151 = smul.addr %s150, 8
      %s152 = scalar_lea.vmem %s2, %s151
      %p153 = scmp.lt.s32.totalorder %s15, 1
      %s154 = scalar_select %p153, %s15, 1
      %s155 = scalar_lea.vmem %s3, %s154
      %s156 = smul.u32 %s15, 8
      %s157 = sld [smem:[#allocation3]]
      %v158 = vld [vmem:[%s152] sm:$0xff]
      %159 = vmax.xlane.f32.xlu0 %v158
      %v160 = vpop.xlane.xlu0 %159
      %v161 = vsub.f32 %v158, %v160
      %v162 = vmul.f32 %v161, 1.442695
      %v163 = vpow.pop %v162
      %164 = vadd.xlane.f32.xlu0 %v163
      %v165 = vpop.xlane.xlu0 %164
      %v166 = vlog2.pop %v165
      %v167 = vmul.f32 %v166, 0.6931472
      %v168 = vld [vmem:[%s148] sm:$0xff]
      %v169 = vlaneseq
      %v170 = vand.u32 %v169, 127
      %171 = vset.pattern.permute.xlu0 0
      %172 = vperm.xlu0 %171, %v168
      %v173 = vpop.permute.xlu0 %172
      %vm174 = vcmp.eq.s32.totalorder %v170, %v173
      %v175 = vsel %vm174, %v161, 0.0
      %176 = vadd.xlane.f32.xlu0 %v175
      %v177 = vpop.xlane.xlu0 %176
      %v178 = vsub.f32 %v167, %v177
      %v179 = vlaneseq
      %v180 = vshrl.u32 %v179, 7
      %v181 = vstv %s156
      %v182 = vadd.s32 %v180, %v181
      %v183 = vstv %s157
      %vm184 = vcmp.lt.s32.totalorder %v182, %v183
      %v185 = vsel %vm184, %v178, 0.0
      %vm186 = vcmask 7168
      %v187 = vsel %vm186, %v185, 0.0
      %188 = vadd.xlane.f32.xlu0 %v187
      %v189 = vpop.xlane.xlu0 %188
      %v190 = vrot.slane %v189, 4
      %v191 = vadd.f32 %v189, %v190
      %v192 = vrot.slane %v191, 2
      %v193 = vadd.f32 %v191, %v192
      %v194 = vrot.slane %v193, 1
      %v195 = vadd.f32 %v193, %v194
      %s196 = vtos %v195
      %vm197 = vcmp.eq.s32.totalorder %v170, 0
      %v198 = vstv %s196
      %v199 = vsel %vm197, %v198, 0.0
      %200 = vst [vmem:[%s155] sm:$0x1] %v199
      %p201 = scmp.lt.s32.totalorder %s15, 1
      %s202 = scalar_select %p201, %s15, 1
      %s203 = scalar_lea.vmem %s3, %s202
      // Predicated region
      $region29: #{selc_ce_loss.1} parent=27 // pred_check
        %p204 = pneg %p85
      $region30: #{selc_ce_loss.1} parent=27 // pred_check_branch
        %206 = sbr.rel (%p204) target = $region32
      $region31: #{selc_ce_loss.1} parent=27 // pred_region
        _
      $region32: #{selc_ce_loss.1} parent=27 // pred_fallthru
        _
    $region28: #{selc_ce_loss.1} parent=5 // pred_fallthru
      _
    %p207 = scmp.le.s32.totalorder 2, %s10
    // Predicated region
    $region33: #{selc_ce_loss.1} parent=5 // pred_check
      %p208 = pneg %p207
    $region34: #{selc_ce_loss.1} parent=5 // pred_check_branch
      %210 = sbr.rel (%p208) target = $region36
    $region35: #{selc_ce_loss.1} parent=5 // pred_region
      %s211 = ssub.s32 %s10, 2
      // Predicated region
      $region37: #{selc_ce_loss.1} parent=35 // pred_check
        %p212 = pneg %p91
      $region38: #{selc_ce_loss.1} parent=35 // pred_check_branch
        %214 = sbr.rel (%p212) target = $region40
      $region39: #{selc_ce_loss.1} parent=35 // pred_region
        %p215 = scmp.lt.s32.totalorder %s16, 1
        %s216 = scalar_select %p215, %s16, 1
        %s217 = scalar_lea.vmem %s3, %s216
      $region40: #{selc_ce_loss.1} parent=35 // pred_fallthru
        _
    $region36: #{selc_ce_loss.1} parent=5 // pred_fallthru
      _
  $region6: #{selc_ce_loss.1} parent=0 // loop_footer
    %s14 = sadd.s32 1, %s10
  $region7: #{selc_ce_loss.1} parent=0 // loop_footer_branch
    %9 = sbr.rel target = $region3
  $region8: #{selc_ce_loss.1} parent=0 // loop_exit
    _

</llo_original>
